<compile_context>
chip_gen: v7x
topology: tpu7x:2x2x1
jax: 0.10.0
libtpu: 0.0.40
codegen_flags: <defaults>
</compile_context>

<pallas_src>
import functools

import jax
import jax.numpy as jnp
from jax.experimental import pallas as pl
from jax.experimental.pallas import tpu as pltpu


# ----------------------------------------------------------------------------
# Kernel 1: sigmoid focal loss (gamma=2), fused elementwise + full reduction.
# ----------------------------------------------------------------------------
def _focal_loss_kernel(logits_ref, targets_ref, out_ref, *, alpha):
    x = logits_ref[...]
    t = targets_ref[...]
    p = 1.0 / (1.0 + jnp.exp(-x))
    # numerically stable BCE-with-logits (matches F.binary_cross_entropy_with_logits)
    ce = jnp.maximum(x, 0.0) - x * t + jnp.log(1.0 + jnp.exp(-jnp.abs(x)))
    p_t = p * t + (1.0 - p) * (1.0 - t)
    loss = ce * (1.0 - p_t) * (1.0 - p_t)                      # gamma = 2
    loss = (alpha * t + (1.0 - alpha) * (1.0 - t)) * loss
    out_ref[...] = jnp.sum(loss, axis=(0, 1), keepdims=True)


def sigmoid_focal_loss_sum(logits2d, targets2d, alpha):
    n, c = logits2d.shape
    out = pl.pallas_call(
        functools.partial(_focal_loss_kernel, alpha=alpha),
        out_shape=jax.ShapeDtypeStruct((1, 1), jnp.float32),
        in_specs=[pl.BlockSpec((n, c), lambda: (0, 0)),
                  pl.BlockSpec((n, c), lambda: (0, 0))],
        out_specs=pl.BlockSpec((1, 1), lambda: (0, 0)),
    )(logits2d, targets2d)
    return out[0, 0]


# ----------------------------------------------------------------------------
# Kernel 2: matched-pair segment losses. One launch yields the per-pair IoUs
# (reused for the focal targets), the L1 sum, and the (1-IoU) sum.
# ----------------------------------------------------------------------------
def _matched_segment_kernel(src_ref, tgt_ref, iou_ref, l1_ref, iouloss_ref):
    src = src_ref[...]                 # (N, 2)  (center, width)
    tgt = tgt_ref[...]                 # (N, 2)
    l1_ref[...] = jnp.sum(jnp.abs(src - tgt), axis=(0, 1), keepdims=True)
    s1 = src[:, 0:1] - 0.5 * src[:, 1:2]
    s2 = src[:, 0:1] + 0.5 * src[:, 1:2]
    t1 = tgt[:, 0:1] - 0.5 * tgt[:, 1:2]
    t2 = tgt[:, 0:1] + 0.5 * tgt[:, 1:2]
    inter = jnp.maximum(jnp.minimum(s2, t2) - jnp.maximum(s1, t1), 0.0)
    union = (s2 - s1) + (t2 - t1) - inter
    iou = inter / union                # (N, 1)
    iou_ref[...] = iou
    iouloss_ref[...] = jnp.sum(1.0 - iou, axis=(0, 1), keepdims=True)


def matched_segment_losses(src_cw, tgt_cw):
    n = src_cw.shape[0]
    ious, l1_sum, iou_loss_sum = pl.pallas_call(
        _matched_segment_kernel,
        out_shape=(jax.ShapeDtypeStruct((n, 1), jnp.float32),
                   jax.ShapeDtypeStruct((1, 1), jnp.float32),
                   jax.ShapeDtypeStruct((1, 1), jnp.float32)),
        in_specs=[pl.BlockSpec((n, 2), lambda: (0, 0)),
                  pl.BlockSpec((n, 2), lambda: (0, 0))],
        out_specs=(pl.BlockSpec((n, 1), lambda: (0, 0)),
                   pl.BlockSpec((1, 1), lambda: (0, 0)),
                   pl.BlockSpec((1, 1), lambda: (0, 0))),
    )(src_cw, tgt_cw)
    return ious[:, 0], l1_sum[0, 0], iou_loss_sum[0, 0]


# ----------------------------------------------------------------------------
# Kernel 3: actionness loss — pairwise IoU (all preds x all GT segments),
# row max, L1 against pred_actionness, all fused into one scalar.
# ----------------------------------------------------------------------------
def _actionness_kernel(src_ref, tgt_t_ref, act_ref, out_ref):
    src = src_ref[...]                 # (P, 2)
    tgt = tgt_t_ref[...]               # (2, M)  rows: centers, widths
    act = act_ref[...]                 # (P, 1)
    s1 = src[:, 0:1] - 0.5 * src[:, 1:2]
    s2 = src[:, 0:1] + 0.5 * src[:, 1:2]
    t1 = tgt[0:1, :] - 0.5 * tgt[1:2, :]
    t2 = tgt[0:1, :] + 0.5 * tgt[1:2, :]
    inter = jnp.maximum(jnp.minimum(s2, t2) - jnp.maximum(s1, t1), 0.0)  # (P, M)
    union = (s2 - s1) + (t2 - t1) - inter
    iou = inter / union
    gt_iou = jnp.max(iou, axis=1, keepdims=True)                        # (P, 1)
    out_ref[...] = jnp.sum(jnp.abs(act - gt_iou), axis=(0, 1), keepdims=True)


def actionness_l1_sum(src_cw, tgt_cw_t, actionness):
    p = src_cw.shape[0]
    m = tgt_cw_t.shape[1]
    out = pl.pallas_call(
        _actionness_kernel,
        out_shape=jax.ShapeDtypeStruct((1, 1), jnp.float32),
        in_specs=[pl.BlockSpec((p, 2), lambda: (0, 0)),
                  pl.BlockSpec((2, m), lambda: (0, 0)),
                  pl.BlockSpec((p, 1), lambda: (0, 0))],
        out_specs=pl.BlockSpec((1, 1), lambda: (0, 0)),
    )(src_cw, tgt_cw_t, actionness)
    return out[0, 0]


# ----------------------------------------------------------------------------
# Kernel 4: attention-consistency KL (loss_QQ / loss_KK). Grid over slabs,
# scalar accumulator output with constant index_map ("arbitrary" axis).
#   contract_axis=1: Gram = C @ C^T   (QQ)
#   contract_axis=0: Gram = C^T @ C   (KK)
# ----------------------------------------------------------------------------
def _attn_kl_kernel(srcw_ref, cw_ref, out_ref, *, contract_axis):
    @pl.when(pl.program_id(0) == 0)
    def _():
        out_ref[...] = jnp.zeros_like(out_ref)

    c = cw_ref[0]                      # (Q, T)
    srcw = srcw_ref[0]                 # (Q, Q) or (T, T), already softmaxed weights
    norm = jnp.sqrt(jnp.sum(c * c, axis=-1, keepdims=True))
    c = c / jnp.maximum(norm, 1e-12)   # F.normalize(p=2, dim=-1)
    gram = jax.lax.dot_general(
        c, c, (((contract_axis,), (contract_axis,)), ((), ())),
        preferred_element_type=jnp.float32)
    m = jnp.max(gram, axis=-1, keepdims=True)
    e = jnp.exp(gram - m)
    tgt = e / jnp.sum(e, axis=-1, keepdims=True) + 1e-12
    kl = tgt * (jnp.log(tgt) - jnp.log(srcw + 1e-12))   # F.kl_div(log_target=True)
    out_ref[...] += jnp.sum(kl, axis=(0, 1), keepdims=True)


def attn_kl_sum(src_w, c_w, contract_axis):
    g = src_w.shape[0]
    out = pl.pallas_call(
        functools.partial(_attn_kl_kernel, contract_axis=contract_axis),
        grid=(g,),
        out_shape=jax.ShapeDtypeStruct((1, 1), jnp.float32),
        in_specs=[pl.BlockSpec((1,) + src_w.shape[1:], lambda i: (i, 0, 0)),
                  pl.BlockSpec((1,) + c_w.shape[1:], lambda i: (i, 0, 0))],
        out_specs=pl.BlockSpec((1, 1), lambda i: (0, 0)),
        compiler_params=pltpu.CompilerParams(
            dimension_semantics=("arbitrary",)),
    )(src_w, c_w)
    return out[0, 0]


# ----------------------------------------------------------------------------
# SetCriterion.forward (Pallas path)
# ----------------------------------------------------------------------------
def set_criterion_losses(outputs, targets, indices, num_classes, focal_alpha=0.25):
    pred_logits = outputs["pred_logits"]          # (B, Q, C)
    pred_segments = outputs["pred_segments"]      # (B, Q, 2) (center, width)
    pred_actionness = outputs["pred_actionness"]  # (B, Q, 1)
    Qw = outputs["Q_weights"]                     # (L, B, Q, Q)
    Cw = outputs["C_weights"]                     # (L, B, Q, T)
    Kw = outputs["K_weights"]                     # (L, B, T, T)
    labels = targets["labels"]                    # (B, n_t) int32
    segments = targets["segments"]                # (B, n_t, 2)
    src_idx, tgt_idx = indices                    # each (B, n_t) int32

    B, Q, _ = pred_logits.shape
    L, _, _, T = Cw.shape
    n_t = labels.shape[1]
    # TODO(synk): distributed all_reduce of num_segments (multi-host) is out of scope.
    num_segments = jnp.maximum(jnp.asarray(B * n_t, jnp.float32), 1.0)

    batch_idx = jnp.repeat(jnp.arange(B), n_t)
    src_flat = src_idx.reshape(-1)
    tgt_flat = tgt_idx.reshape(-1)
    src_seg = pred_segments[batch_idx, src_flat]  # (B*n_t, 2)
    tgt_seg = segments[batch_idx, tgt_flat]       # (B*n_t, 2)

    # fused matched-segment kernel: per-pair IoU + L1 sum + (1-IoU) sum
    ious, l1_sum, iou_loss_sum = matched_segment_losses(src_seg, tgt_seg)
    loss_segments = l1_sum / num_segments
    loss_iou = iou_loss_sum / num_segments

    # focal classification targets (tiny data-dependent scatter kept in JAX)
    target_classes_o = labels[batch_idx, tgt_flat]
    target_classes = jnp.full((B, Q), num_classes, jnp.int32)
    target_classes = target_classes.at[batch_idx, src_flat].set(target_classes_o)
    onehot = jax.nn.one_hot(target_classes, num_classes + 1, dtype=jnp.float32)
    onehot = onehot.at[batch_idx, src_flat].multiply(ious[:, None])
    onehot = onehot[:, :, :num_classes]
    focal_sum = sigmoid_focal_loss_sum(
        pred_logits.reshape(B * Q, num_classes),
        onehot.reshape(B * Q, num_classes), alpha=focal_alpha)
    # sigmoid_focal_loss = sum/Q/num_segments; loss_labels multiplies by Q.
    loss_ce = focal_sum / num_segments
    # TODO(synk): class_error / score_gap logging metrics (argsort-based) are
    # diagnostics only and are not kernelized here.

    # actionness loss
    act_sum = actionness_l1_sum(pred_segments.reshape(-1, 2),
                                segments.reshape(-1, 2).T,
                                pred_actionness.reshape(-1, 1))
    loss_actionness = act_sum / (B * Q)

    # attention-consistency KL losses
    loss_qq = attn_kl_sum(Qw.reshape(L * B, Q, Q),
                          Cw.reshape(L * B, Q, T), contract_axis=1) / (L * B * Q)
    loss_kk = attn_kl_sum(jnp.mean(Kw, axis=0),
                          jnp.mean(Cw, axis=0), contract_axis=0) / (B * T)

    # NOTE: the original module stores the actionness term under 'loss_iou'
    # (dict-update clobber); kept under its own key so both are verifiable.
    return {"loss_ce": loss_ce,
            "loss_segments": loss_segments,
            "loss_iou": loss_iou,
            "loss_actionness": loss_actionness,
            "loss_QQ": loss_qq,
            "loss_KK": loss_kk}


# ----------------------------------------------------------------------------
# Pure-JAX reference for the correctness check.
# ----------------------------------------------------------------------------
def reference_losses(outputs, targets, indices, num_classes, focal_alpha=0.25):
    pred_logits = outputs["pred_logits"]
    pred_segments = outputs["pred_segments"]
    pred_actionness = outputs["pred_actionness"]
    Qw, Cw, Kw = outputs["Q_weights"], outputs["C_weights"], outputs["K_weights"]
    labels, segments = targets["labels"], targets["segments"]
    src_idx, tgt_idx = indices
    B, Q, _ = pred_logits.shape
    L, _, _, T = Cw.shape
    n_t = labels.shape[1]
    num_segments = jnp.maximum(jnp.asarray(B * n_t, jnp.float32), 1.0)

    batch_idx = jnp.repeat(jnp.arange(B), n_t)
    src_flat, tgt_flat = src_idx.reshape(-1), tgt_idx.reshape(-1)
    src_seg = pred_segments[batch_idx, src_flat]
    tgt_seg = segments[batch_idx, tgt_flat]

    def cw_to_t1t2(s):
        return jnp.stack([s[..., 0] - 0.5 * s[..., 1],
                          s[..., 0] + 0.5 * s[..., 1]], -1)

    def pairwise_iou(a, b):
        l = jnp.maximum(a[:, None, 0], b[None, :, 0])
        r = jnp.minimum(a[:, None, 1], b[None, :, 1])
        inter = jnp.maximum(r - l, 0.0)
        union = (a[:, None, 1] - a[:, None, 0]) + (b[None, :, 1] - b[None, :, 0]) - inter
        return inter / union

    ious = jnp.diagonal(pairwise_iou(cw_to_t1t2(src_seg), cw_to_t1t2(tgt_seg)))
    loss_segments = jnp.sum(jnp.abs(src_seg - tgt_seg)) / num_segments
    loss_iou = jnp.sum(1.0 - ious) / num_segments

    target_classes_o = labels[batch_idx, tgt_flat]
    target_classes = jnp.full((B, Q), num_classes, jnp.int32)
    target_classes = target_classes.at[batch_idx, src_flat].set(target_classes_o)
    onehot = jax.nn.one_hot(target_classes, num_classes + 1, dtype=jnp.float32)
    onehot = onehot.at[batch_idx, src_flat].multiply(ious[:, None])
    t = onehot[:, :, :num_classes]
    x = pred_logits
    p = 1.0 / (1.0 + jnp.exp(-x))
    ce = jnp.maximum(x, 0.0) - x * t + jnp.log(1.0 + jnp.exp(-jnp.abs(x)))
    p_t = p * t + (1.0 - p) * (1.0 - t)
    focal = (focal_alpha * t + (1.0 - focal_alpha) * (1.0 - t)) * ce * (1.0 - p_t) ** 2
    loss_ce = jnp.sum(focal) / num_segments

    iou_mat = pairwise_iou(cw_to_t1t2(pred_segments.reshape(-1, 2)),
                           cw_to_t1t2(segments.reshape(-1, 2)))
    gt_iou = jnp.max(iou_mat, axis=1)
    loss_actionness = jnp.mean(jnp.abs(pred_actionness.reshape(-1) - gt_iou))

    def softmax_last(z):
        m = jnp.max(z, axis=-1, keepdims=True)
        e = jnp.exp(z - m)
        return e / jnp.sum(e, axis=-1, keepdims=True)

    def kl_mean(src_w, c, contract_first):
        cn = c / jnp.maximum(jnp.sqrt(jnp.sum(c * c, -1, keepdims=True)), 1e-12)
        if contract_first:
            gram = jnp.einsum("gqt,gqs->gts", cn, cn, precision="highest")
        else:
            gram = jnp.einsum("gqt,gpt->gqp", cn, cn, precision="highest")
        tg = softmax_last(gram) + 1e-12
        kl = tg * (jnp.log(tg) - jnp.log(src_w + 1e-12))
        return jnp.mean(jnp.sum(kl, axis=-1))

    loss_qq = kl_mean(Qw.reshape(L * B, Q, Q), Cw.reshape(L * B, Q, T), False)
    loss_kk = kl_mean(jnp.mean(Kw, 0), jnp.mean(Cw, 0), True)

    return {"loss_ce": loss_ce, "loss_segments": loss_segments, "loss_iou": loss_iou,
            "loss_actionness": loss_actionness, "loss_QQ": loss_qq, "loss_KK": loss_kk}


if __name__ == "__main__":
    B, Q, NUM_CLASSES, T, L, NT = 2, 8, 20, 16, 2, 3
    key = jax.random.PRNGKey(0)
    ks = jax.random.split(key, 10)

    def sm(z):
        m = jnp.max(z, -1, keepdims=True)
        e = jnp.exp(z - m)
        return e / jnp.sum(e, -1, keepdims=True)

    pred_logits = jax.random.normal(ks[0], (B, Q, NUM_CLASSES), jnp.float32)
    centers = jax.random.uniform(ks[1], (B, Q), jnp.float32, 0.1, 0.9)
    widths = jax.random.uniform(ks[2], (B, Q), jnp.float32, 0.05, 0.4)
    pred_segments = jnp.stack([centers, widths], -1)
    pred_actionness = 1.0 / (1.0 + jnp.exp(-jax.random.normal(ks[3], (B, Q, 1), jnp.float32)))
    Q_weights = sm(jax.random.normal(ks[4], (L, B, Q, Q), jnp.float32))
    C_weights = sm(jax.random.normal(ks[5], (L, B, Q, T), jnp.float32))
    K_weights = sm(jax.random.normal(ks[6], (L, B, T, T), jnp.float32))
    labels = jax.random.randint(ks[7], (B, NT), 0, NUM_CLASSES)
    tgt_c = jax.random.uniform(ks[8], (B, NT), jnp.float32, 0.2, 0.8)
    tgt_w = jax.random.uniform(ks[9], (B, NT), jnp.float32, 0.05, 0.3)
    segments = jnp.stack([tgt_c, tgt_w], -1)

    outputs = dict(pred_logits=pred_logits, pred_segments=pred_segments,
                   pred_actionness=pred_actionness, Q_weights=Q_weights,
                   C_weights=C_weights, K_weights=K_weights)
    targets = dict(labels=labels, segments=segments)

    # TODO(synk): the Hungarian matcher is an external host-side module
    # (scipy linear_sum_assignment); fixed deterministic matches stand in here.
    src_idx = jnp.array([[1, 4, 6], [0, 3, 5]], jnp.int32)
    tgt_idx = jnp.array([[2, 0, 1], [1, 2, 0]], jnp.int32)
    indices = (src_idx, tgt_idx)
    # TODO(synk): aux_outputs loop just re-runs the same kernels per decoder layer.

    losses = jax.block_until_ready(
        set_criterion_losses(outputs, targets, indices, NUM_CLASSES))
    ref = reference_losses(outputs, targets, indices, NUM_CLASSES)
    for name in ref:
        assert jnp.allclose(losses[name], ref[name], atol=1e-4, rtol=1e-4), (
            name, losses[name], ref[name])

    print("KERNEL_OK")
</pallas_src>

<mosaic_0001>
module attributes {stable_mosaic.version = 11 : i64} {
  func.func @_matched_segment_kernel(%arg0: memref<6x2xf32, #tpu.memory_space<vmem>>, %arg1: memref<6x2xf32, #tpu.memory_space<vmem>>, %arg2: memref<6x1xf32, #tpu.memory_space<vmem>>, %arg3: memref<1x1xf32, #tpu.memory_space<vmem>>, %arg4: memref<1x1xf32, #tpu.memory_space<vmem>>) attributes {dimension_semantics = [], scalar_prefetch = 0 : i64, scratch_operands = 0 : i64, tpu.core_type = #tpu.core_type<tc>} {
    %c0 = arith.constant 0 : index
    %c0_0 = arith.constant 0 : index
    %0 = vector.load %arg0[%c0, %c0_0] : memref<6x2xf32, #tpu.memory_space<vmem>>, vector<6x2xf32>
    %c0_1 = arith.constant 0 : index
    %c0_2 = arith.constant 0 : index
    %1 = vector.load %arg1[%c0_1, %c0_2] : memref<6x2xf32, #tpu.memory_space<vmem>>, vector<6x2xf32>
    %2 = arith.subf %0, %1 : vector<6x2xf32>
    %3 = math.absf %2 : vector<6x2xf32>
    %4 = vector.shape_cast %3 : vector<6x2xf32> to vector<1x6x2xf32>
    %cst = arith.constant dense<0.000000e+00> : vector<1xf32>
    %5 = vector.multi_reduction <add>, %4, %cst [1, 2] : vector<1x6x2xf32> to vector<1xf32>
    %6 = vector.shape_cast %5 : vector<1xf32> to vector<1x1x1xf32>
    %7 = vector.extract %6[0, 0, 0] : f32 from vector<1x1x1xf32>
    %8 = vector.broadcast %7 : f32 to vector<1x1xf32>
    %c0_3 = arith.constant 0 : index
    %c0_4 = arith.constant 0 : index
    %9 = vector.load %arg3[%c0_3, %c0_4] : memref<1x1xf32, #tpu.memory_space<vmem>>, vector<1x1xf32>
    tpu.vector_store %arg3[%c0_3, %c0_4], %8 {strides = array<i32>} : memref<1x1xf32, #tpu.memory_space<vmem>>, vector<1x1xf32>,
    %10 = vector.extract_strided_slice %0 {offsets = [0, 0], sizes = [6, 1], strides = [1, 1]} : vector<6x2xf32> to vector<6x1xf32>
    %11 = vector.extract_strided_slice %0 {offsets = [0, 1], sizes = [6, 1], strides = [1, 1]} : vector<6x2xf32> to vector<6x1xf32>
    %cst_5 = arith.constant 5.000000e-01 : f32
    %12 = vector.broadcast %cst_5 : f32 to vector<6x1xf32>
    %13 = arith.mulf %12, %11 : vector<6x1xf32>
    %14 = arith.subf %10, %13 : vector<6x1xf32>
    %15 = vector.extract_strided_slice %0 {offsets = [0, 0], sizes = [6, 1], strides = [1, 1]} : vector<6x2xf32> to vector<6x1xf32>
    %16 = vector.extract_strided_slice %0 {offsets = [0, 1], sizes = [6, 1], strides = [1, 1]} : vector<6x2xf32> to vector<6x1xf32>
    %cst_6 = arith.constant 5.000000e-01 : f32
    %17 = vector.broadcast %cst_6 : f32 to vector<6x1xf32>
    %18 = arith.mulf %17, %16 : vector<6x1xf32>
    %19 = arith.addf %15, %18 : vector<6x1xf32>
    %20 = vector.extract_strided_slice %1 {offsets = [0, 0], sizes = [6, 1], strides = [1, 1]} : vector<6x2xf32> to vector<6x1xf32>
    %21 = vector.extract_strided_slice %1 {offsets = [0, 1], sizes = [6, 1], strides = [1, 1]} : vector<6x2xf32> to vector<6x1xf32>
    %cst_7 = arith.constant 5.000000e-01 : f32
    %22 = vector.broadcast %cst_7 : f32 to vector<6x1xf32>
    %23 = arith.mulf %22, %21 : vector<6x1xf32>
    %24 = arith.subf %20, %23 : vector<6x1xf32>
    %25 = vector.extract_strided_slice %1 {offsets = [0, 0], sizes = [6, 1], strides = [1, 1]} : vector<6x2xf32> to vector<6x1xf32>
    %26 = vector.extract_strided_slice %1 {offsets = [0, 1], sizes = [6, 1], strides = [1, 1]} : vector<6x2xf32> to vector<6x1xf32>
    %cst_8 = arith.constant 5.000000e-01 : f32
    %27 = vector.broadcast %cst_8 : f32 to vector<6x1xf32>
    %28 = arith.mulf %27, %26 : vector<6x1xf32>
    %29 = arith.addf %25, %28 : vector<6x1xf32>
    %30 = arith.minimumf %19, %29 : vector<6x1xf32>
    %31 = arith.maximumf %14, %24 : vector<6x1xf32>
    %32 = arith.subf %30, %31 : vector<6x1xf32>
    %cst_9 = arith.constant 0.000000e+00 : f32
    %33 = vector.broadcast %cst_9 : f32 to vector<6x1xf32>
    %34 = arith.maximumf %32, %33 : vector<6x1xf32>
    %35 = arith.subf %19, %14 : vector<6x1xf32>
    %36 = arith.subf %29, %24 : vector<6x1xf32>
    %37 = arith.addf %35, %36 : vector<6x1xf32>
    %38 = arith.subf %37, %34 : vector<6x1xf32>
    %39 = arith.divf %34, %38 : vector<6x1xf32>
    %c0_10 = arith.constant 0 : index
    %c0_11 = arith.constant 0 : index
    %40 = vector.load %arg2[%c0_10, %c0_11] : memref<6x1xf32, #tpu.memory_space<vmem>>, vector<6x1xf32>
    tpu.vector_store %arg2[%c0_10, %c0_11], %39 {strides = array<i32>} : memref<6x1xf32, #tpu.memory_space<vmem>>, vector<6x1xf32>,
    %cst_12 = arith.constant 1.000000e+00 : f32
    %41 = vector.broadcast %cst_12 : f32 to vector<6x1xf32>
    %42 = arith.subf %41, %39 : vector<6x1xf32>
    %43 = vector.shape_cast %42 : vector<6x1xf32> to vector<1x6x1xf32>
    %cst_13 = arith.constant dense<0.000000e+00> : vector<1xf32>
    %44 = vector.multi_reduction <add>, %43, %cst_13 [1, 2] : vector<1x6x1xf32> to vector<1xf32>
    %45 = vector.shape_cast %44 : vector<1xf32> to vector<1x1x1xf32>
    %46 = vector.extract %45[0, 0, 0] : f32 from vector<1x1x1xf32>
    %47 = vector.broadcast %46 : f32 to vector<1x1xf32>
    %c0_14 = arith.constant 0 : index
    %c0_15 = arith.constant 0 : index
    %48 = vector.load %arg4[%c0_14, %c0_15] : memref<1x1xf32, #tpu.memory_space<vmem>>, vector<1x1xf32>
    tpu.vector_store %arg4[%c0_14, %c0_15], %47 {strides = array<i32>} : memref<1x1xf32, #tpu.memory_space<vmem>>, vector<1x1xf32>,
    return
  }
}

</mosaic_0001>

<llo_original>
// kernel: tpu_custom_call.1
$region0: #{tpu_custom_call.1}
  #allocation0 [shape = 'u32[]', space=smem, size = 0x4, offset = 0x4, fixed_abs, tag = 'smem constant byte address 0x4 - core index']
  #allocation1 [shape = 'u32[144,128]{1,0:T(1,128)}', space=vmem, size = 0x12000, scoped, tag = 'internal scratch']
  %s0 = inlined_call_operand.vmem [shape: f32[6,2], index: 0, kind: input, shape index: {}]
  %s1 = inlined_call_operand.vmem [shape: f32[6,2], index: 1, kind: input, shape index: {}]
  %s2 = inlined_call_operand.vmem [shape: f32[6,1], index: 2, kind: output, shape index: {0}]
  %s3 = inlined_call_operand.hbm [shape: f32[1,1], index: 3, kind: output, shape index: {1}]
  %s4 = inlined_call_operand.hbm [shape: f32[1,1], index: 4, kind: output, shape index: {2}]
  %5 = xla_tuple %s2, %s3, %s4
  %s6 = sld [smem:[#allocation0]]
  $region34: #{tpu_custom_call.1} parent=0
    _
  %s8 = ssub.s32 1, %s6
  %s9 = scalar_select 0, %s8, %s6
  $region1: #{tpu_custom_call.1} parent=0
    #allocation2 [shape = 'u8[512]{0}', space=vmem, size = 0x400, scoped, tag = 'output window, operand 1, single buffered']
    #allocation3 [shape = 's32[1]{0}', space=sflag, size = 0x4, scoped, tag = 'scoped memory for tpu_custom_call.1']
    #allocation4 [shape = 'u8[512]{0}', space=vmem, size = 0x400, scoped, tag = 'output window, operand 2, single buffered']
    #allocation5 [shape = 's32[1]{0}', space=sflag, size = 0x4, scoped, tag = 'scoped memory for tpu_custom_call.1']
    %10 = vsyncpa [#allocation3], 0
    %11 = vsyncpa [#allocation5], 0
    // Predicated region
    $region2: #{tpu_custom_call.1} parent=1 // pred_check
      _
    $region3: #{tpu_custom_call.1} parent=1 // pred_check_branch
      %13 = sbr.rel (0) target = $region5
    $region4: #{tpu_custom_call.1} parent=1 // pred_region
      _
    $region5: #{tpu_custom_call.1} parent=1 // pred_fallthru
      _
    // Predicated region
    $region6: #{tpu_custom_call.1} parent=1 // pred_check
      _
    $region7: #{tpu_custom_call.1} parent=1 // pred_check_branch
      %15 = sbr.rel (0) target = $region9
    $region8: #{tpu_custom_call.1} parent=1 // pred_region
      _
    $region9: #{tpu_custom_call.1} parent=1 // pred_fallthru
      _
    %v16 = vld [vmem:[%s0] sm:$0x3f]
    %v17 = vld [vmem:[%s1] sm:$0x3f]
    %v18 = vsub.f32 %v16, %v17
    %v19 = vand.u32 2147483647, %v18
    %vm20 = vcmask 13312
    %v21 = vsel %vm20, %v19, 0.0
    %22 = vadd.xlane.f32.xlu0 %v21
    %v23 = vpop.xlane.xlu0 %22
    %v24 = vrot.slane %v23, 4
    %v25 = vadd.f32 %v23, %v24
    %v26 = vrot.slane %v25, 2
    %v27 = vadd.f32 %v25, %v26
    %v28 = vrot.slane %v27, 1
    %v29 = vadd.f32 %v27, %v28
    %s30 = vtos %v29
    %v31 = vstv %s30
    %vm32 = vcmask 0
    %33 = vst.msk [vmem:[#allocation2] sm:$0x1] %vm32, %v31
    %v34 = vmul.f32 %v16, 0.5
    %36 = vrot.lane.b32.xlu0 %v34, 127
    %v37 = vpop.permute.xlu0 %36
    %v39 = vsub.f32 %v16, %v37
    %v40 = vadd.f32 %v16, %v37
    %v41 = vmul.f32 %v17, 0.5
    %43 = vrot.lane.b32.xlu0 %v41, 127
    %v44 = vpop.permute.xlu0 %43
    %v46 = vsub.f32 %v17, %v44
    %v47 = vadd.f32 %v17, %v44
    %v48 = vmin.f32 %v40, %v47
    %v49 = vmax.f32 %v39, %v46
    %v50 = vsub.f32 %v48, %v49
    %v51 = vmax.f32 %v50, 0.0
    %v52 = vsub.f32 %v40, %v39
    %v53 = vsub.f32 %v47, %v46
    %v54 = vadd.f32 %v52, %v53
    %v55 = vsub.f32 %v54, %v51
    %v56 = vrcp.pop %v55
    %v57 = vmul.f32 %v51, %v56
    %vm58 = vcmask 5120
    %59 = vst.msk [vmem:[%s2] sm:$0x3f] %vm58, %v57
    %v60 = vsub.f32 1.0, %v57
    %v61 = vsel %vm58, %v60, 0.0
    %62 = vadd.xlane.f32.xlu0 %v61
    %v63 = vpop.xlane.xlu0 %62
    %v64 = vrot.slane %v63, 4
    %v65 = vadd.f32 %v63, %v64
    %v66 = vrot.slane %v65, 2
    %v67 = vadd.f32 %v65, %v66
    %v68 = vrot.slane %v67, 1
    %v69 = vadd.f32 %v67, %v68
    %s70 = vtos %v69
    %v71 = vstv %s70
    %72 = vst.msk [vmem:[#allocation4] sm:$0x1] %vm32, %v71
    // Predicated region
    $region10: #{tpu_custom_call.1} parent=1 // pred_check
      _
    $region11: #{tpu_custom_call.1} parent=1 // pred_check_branch
      %74 = sbr.rel (0) target = $region13
    $region12: #{tpu_custom_call.1} parent=1 // pred_region
      _
    $region13: #{tpu_custom_call.1} parent=1 // pred_fallthru
      _
    // Predicated region
    $region14: #{tpu_custom_call.1} parent=1 // pred_check
      _
    $region15: #{tpu_custom_call.1} parent=1 // pred_check_branch
      %76 = sbr.rel (0) target = $region17
    $region16: #{tpu_custom_call.1} parent=1 // pred_region
      %s78 = ssub.s32 16, 16
      %79 = vsyncadd [#allocation3], %s78
      %s81 = sshll.u32 [#allocation2], 4
      %s82 = int_to_ptr.vmem [resolvable:$true] %s81
      %84 = dma.vmem_to_hbm [thread:$0]  %s82, 16, %s3, [#allocation3]
    $region17: #{tpu_custom_call.1} parent=1 // pred_fallthru
      _
    // Predicated region
    $region18: #{tpu_custom_call.1} parent=1 // pred_check
      _
    $region19: #{tpu_custom_call.1} parent=1 // pred_check_branch
      %86 = sbr.rel (0) target = $region21
    $region20: #{tpu_custom_call.1} parent=1 // pred_region
      %s88 = ssub.s32 16, 16
      %89 = vsyncadd [#allocation5], %s88
      %s91 = sshll.u32 [#allocation4], 4
      %s92 = int_to_ptr.vmem [resolvable:$true] %s91
      %94 = dma.vmem_to_hbm [thread:$0]  %s92, 16, %s4, [#allocation5]
    $region21: #{tpu_custom_call.1} parent=1 // pred_fallthru
      _
    // Predicated region
    $region22: #{tpu_custom_call.1} parent=1 // pred_check
      _
    $region23: #{tpu_custom_call.1} parent=1 // pred_check_branch
      %96 = sbr.rel (0) target = $region25
    $region24: #{tpu_custom_call.1} parent=1 // pred_region
      _
    $region25: #{tpu_custom_call.1} parent=1 // pred_fallthru
      _
    // Predicated region
    $region26: #{tpu_custom_call.1} parent=1 // pred_check
      _
    $region27: #{tpu_custom_call.1} parent=1 // pred_check_branch
      %98 = sbr.rel (0) target = $region29
    $region28: #{tpu_custom_call.1} parent=1 // pred_region
      %99 = dma.done [#allocation3], 16
    $region29: #{tpu_custom_call.1} parent=1 // pred_fallthru
      _
    // Predicated region
    $region30: #{tpu_custom_call.1} parent=1 // pred_check
      _
    $region31: #{tpu_custom_call.1} parent=1 // pred_check_branch
      %101 = sbr.rel (0) target = $region33
    $region32: #{tpu_custom_call.1} parent=1 // pred_region
      %102 = dma.done [#allocation5], 16
    $region33: #{tpu_custom_call.1} parent=1 // pred_fallthru
      _
    %103 = vsyncpa [#allocation3], 1
    %104 = vsyncpa [#allocation5], 1

</llo_original>
